<compile_context>
chip_gen: v5e
topology: v5e:2x2
jax: 0.10.0
libtpu: 0.0.40
codegen_flags: <defaults>
</compile_context>

<pallas_src>
import re
import numpy as np
import jax
import jax.numpy as jnp
from jax import lax
from jax.experimental import pallas as pl
from jax.experimental.pallas import tpu as pltpu

D_MODEL = 256          # small stand-in for the module's d_model=2048; all weight
                       # widths scale with d_model here
N_PHONEMES = 189
N_LANGS = 128
SPK_DIM = 128
EMO_DIM = 8
LN_EPS = 1e-5

REQUIRED_KEYS = {'espeak', 'speaker', 'emotion', 'fmax',
                 'pitch_std', 'speaking_rate', 'language_id'}


# ---------------------------------------------------------------------------
# Small helpers (generation-aware tiling policy; all trace-time Python)
# ---------------------------------------------------------------------------
def _round_up(x, m):
    return ((x + m - 1) // m) * m


def _device_kind():
    try:
        return jax.devices()[0].device_kind.lower()
    except Exception:
        return ""


def _is_megacore():
    # chips with 2 TensorCores sharing HBM: v4, v5p, v7x
    k = _device_kind()
    return any(tag in k for tag in ("v4", "v5p", "v7"))


def _max_row_tile():
    # v5e MXU is 4x128^2 -> 128 rows already fills it; v6e/v7x MXUs are 2x256^2
    k = _device_kind()
    if "v5 lite" in k or "v5lite" in k or "v5e" in k:
        return 128
    return 256


def _choose_row_tile(m):
    """Pick the row block size (multiple of 16 for bf16 sublane packing)."""
    max_tile = _max_row_tile()
    if _is_megacore() and m > 32:
        # >= 2 row blocks so the 'parallel' axis shards across both TensorCores
        # (worth it only because the weight is VMEM-resident: one HBM read total)
        half = -(-m // 2)
        return min(max_tile, _round_up(half, 16))
    # single-TC chips (v5e/v6e) or tiny M: one block, no per-step overhead
    return min(max_tile, _round_up(m, 16))


# ---------------------------------------------------------------------------
# Pallas kernel: fused projection + LayerNorm, weight resident in VMEM
# ---------------------------------------------------------------------------
def _proj_layernorm_kernel(x_ref, w_ref, b_ref, g_ref, beta_ref, o_ref):
    # bf16 x bf16 on the MXU, f32 result produced directly (no accumulator RMW)
    y = jnp.dot(x_ref[...], w_ref[...],
                preferred_element_type=jnp.float32) + b_ref[...]
    # f32 LayerNorm epilogue; two-pass variance (non-negative by construction)
    mean = jnp.mean(y, axis=-1, keepdims=True)
    centered = y - mean
    var = jnp.mean(centered * centered, axis=-1, keepdims=True)
    y_hat = centered * lax.rsqrt(var + LN_EPS)
    o_ref[...] = (y_hat * g_ref[...] + beta_ref[...]).astype(o_ref.dtype)


def pallas_project_layernorm(x2d, w_bf16, b, gamma, beta):
    """Fused LayerNorm((M, D) @ (D, D) + b) * gamma + beta, per-row over D."""
    m, d = x2d.shape
    out_dtype = x2d.dtype

    if d * d * 2 > 28 * 1024 * 1024:
        # TODO(synk): re-introduce a K-tiled accumulator variant for d_model >= ~6K
        # where the bf16 weight no longer fits comfortably in VMEM.
        raise NotImplementedError("resident-weight kernel assumes bf16 (d,d) fits VMEM")

    row_tile = _choose_row_tile(m)
    m_pad = _round_up(m, row_tile)

    # pre-cast activations to bf16 (halves activation DMA; no in-kernel convert)
    x2d = x2d.astype(jnp.bfloat16)
    if m_pad != m:
        x2d = jnp.pad(x2d, ((0, m_pad - m), (0, 0)))

    # VMEM budget (bytes), assuming double-buffered inputs/outputs + headroom;
    # kept well under v7x's 64 MiB physical VMEM.
    vmem_budget = (2 * (row_tile * d * 2)     # x blocks (bf16)
                   + 2 * (d * d * 2)          # weight (bf16, constant index map)
                   + 2 * (row_tile * d * 4)   # out blocks (f32)
                   + 8 * 1024 * 1024)         # slack for vectors / compiler scratch
    vmem_budget = max(16 * 1024 * 1024, min(vmem_budget, 48 * 1024 * 1024))

    out = pl.pallas_call(
        _proj_layernorm_kernel,
        out_shape=jax.ShapeDtypeStruct((m_pad, d), out_dtype),
        grid=(m_pad // row_tile,),
        in_specs=[
            pl.BlockSpec((row_tile, d), lambda i: (i, 0)),   # bf16 activations
            pl.BlockSpec((d, d), lambda i: (0, 0)),          # bf16 weight, resident
            pl.BlockSpec((1, d), lambda i: (0, 0)),          # bias (f32)
            pl.BlockSpec((1, d), lambda i: (0, 0)),          # ln gamma (f32)
            pl.BlockSpec((1, d), lambda i: (0, 0)),          # ln beta (f32)
        ],
        out_specs=pl.BlockSpec((row_tile, d), lambda i: (i, 0)),
        compiler_params=pltpu.CompilerParams(
            dimension_semantics=("parallel",),
            vmem_limit_bytes=vmem_budget),
    )(x2d, w_bf16, b.reshape(1, d), gamma.reshape(1, d), beta.reshape(1, d))
    return out[:m]


# ---------------------------------------------------------------------------
# Parameters (deterministic synthetic init, shapes mirror the module __init__)
# ---------------------------------------------------------------------------
def init_params(key, d_model=D_MODEL):
    ks = jax.random.split(key, 10)

    def lin_init(kw, kb, fan_in, out_dim):
        bound = 1.0 / np.sqrt(fan_in)
        w = jax.random.uniform(kw, (fan_in, out_dim), jnp.float32, -bound, bound)
        b = jax.random.uniform(kb, (out_dim,), jnp.float32, -bound, bound)
        return w, b

    spk_w, spk_b = lin_init(ks[1], ks[2], SPK_DIM, d_model)
    proj_w, proj_b = lin_init(ks[8], ks[9], d_model, d_model)
    return dict(
        phoneme_emb=jax.random.normal(ks[0], (N_PHONEMES, d_model), jnp.float32),
        speaker_w=spk_w, speaker_b=spk_b,                     # Linear(128, d_model)
        emotion_w=jax.random.normal(ks[3], (EMO_DIM, d_model), jnp.float32),
        fmax_w=jax.random.normal(ks[4], (1, d_model), jnp.float32),
        pitch_w=jax.random.normal(ks[5], (1, d_model), jnp.float32),
        rate_w=jax.random.normal(ks[6], (1, d_model), jnp.float32),
        lang_emb=jax.random.normal(ks[7], (N_LANGS, d_model), jnp.float32),
        proj_w=proj_w, proj_b=proj_b,                         # Linear(d_model, d_model)
        proj_w_bf16=proj_w.astype(jnp.bfloat16),              # stored bf16: halves HBM read
        ln_gamma=jnp.ones((d_model,), jnp.float32),
        ln_beta=jnp.zeros((d_model,), jnp.float32),
    )


# ---------------------------------------------------------------------------
# Host-side text preprocessing (mirrors EnglishTextConditioner)
# ---------------------------------------------------------------------------
def normalize_text(text):
    # TODO(synk): inflect number-to-words unavailable; use the reference's exception
    # fallback (' ' + number + ' ') instead.
    text = re.sub(r'\d+', lambda m: ' ' + m.group(0) + ' ', text)
    text = text.lower()
    text = re.sub(r'[^\w\s]', ' ', text)
    text = re.sub(r'\s+', ' ', text).strip()
    return text


def tokenize_texts(texts):
    token_ids = [[min(ord(c) % N_PHONEMES, N_PHONEMES - 1) for c in normalize_text(t)]
                 for t in texts]
    max_len = max(len(ids) for ids in token_ids)
    ids_arr = np.zeros((len(texts), max_len), dtype=np.int32)
    mask = np.zeros((len(texts), max_len), dtype=np.float32)
    for i, ids in enumerate(token_ids):
        ids_arr[i, :len(ids)] = ids
        mask[i, :len(ids)] = 1.0
    return jnp.asarray(ids_arr), jnp.asarray(mask)


# ---------------------------------------------------------------------------
# Device-side forward core (jitted: all the tiny ops fuse in XLA, then one
# Pallas call for the dominant projection + LayerNorm)
# ---------------------------------------------------------------------------
def _fused_scalar_conditioners(params, emo, fmax, pitch, rate):
    """emotion / fmax / pitch_std / speaking_rate as one block-diagonal matmul.

    Builds a (B, 4, 11) input whose 4 rows each activate their own weight slice
    of the concatenated (11, D) weight, so one matmul yields the 4 distinct
    sequence rows the module would concatenate.
    """
    assert emo.shape[1] == 1 and fmax.shape[1] == 1
    assert pitch.shape[1] == 1 and rate.shape[1] == 1
    # NOTE: no epsilon, matching the reference `x / x.sum(dim=-1, keepdim=True)`.
    emo = emo / jnp.sum(emo, axis=-1, keepdims=True)
    bs = max(emo.shape[0], fmax.shape[0], pitch.shape[0], rate.shape[0])
    emo = jnp.broadcast_to(emo, (bs, 1, EMO_DIM))
    fmax = jnp.broadcast_to(fmax, (bs, 1, 1))
    pitch = jnp.broadcast_to(pitch, (bs, 1, 1))
    rate = jnp.broadcast_to(rate, (bs, 1, 1))

    xs = jnp.zeros((bs, 4, EMO_DIM + 3), jnp.float32)
    xs = xs.at[:, 0, :EMO_DIM].set(emo[:, 0, :])
    xs = xs.at[:, 1, EMO_DIM + 0].set(fmax[:, 0, 0])
    xs = xs.at[:, 2, EMO_DIM + 1].set(pitch[:, 0, 0])
    xs = xs.at[:, 3, EMO_DIM + 2].set(rate[:, 0, 0])
    w = jnp.concatenate([params['emotion_w'], params['fmax_w'],
                         params['pitch_w'], params['rate_w']], axis=0)   # (11, D)
    return xs @ w                                                        # (B, 4, D)


@jax.jit
def _forward_core(params, ids, mask, spk, emo, fmax, pitch, rate, lang):
    d = params['proj_w'].shape[0]

    # espeak: char-based "phoneme" embedding, zero padding to max_len
    espeak = params['phoneme_emb'][ids] * mask[..., None]                # (B, T, D)

    # speaker: identity apply_cond then Linear(128 -> d_model); tiny -> plain XLA
    speaker = spk @ params['speaker_w'] + params['speaker_b']            # (B, 1, D)

    # emotion / fmax / pitch_std / speaking_rate, fused
    scalars = _fused_scalar_conditioners(params, emo, fmax, pitch, rate) # (B, 4, D)

    # language_id: always embedding row 0
    lang_ids = jnp.zeros(lang.shape[:-1], dtype=jnp.int32)               # (B, 1)
    language = params['lang_emb'][lang_ids]                              # (B, 1, D)

    conds = [espeak, speaker, scalars, language]
    max_bsz = max(c.shape[0] for c in conds)
    assert all(c.shape[0] in (max_bsz, 1) for c in conds)
    conds = [jnp.broadcast_to(c, (max_bsz,) + c.shape[1:]) for c in conds]
    x = jnp.concatenate(conds, axis=-2)                                  # (B, L, D)

    Bc, L, _ = x.shape
    out = pallas_project_layernorm(x.reshape(Bc * L, d),
                                   params['proj_w_bf16'], params['proj_b'],
                                   params['ln_gamma'], params['ln_beta'])
    return out.reshape(Bc, L, d)                                         # norm(project(cat))


def prefix_conditioner_forward(params, cond_dict):
    if not set(cond_dict).issuperset(REQUIRED_KEYS):
        raise ValueError(f'Missing required keys: {REQUIRED_KEYS - set(cond_dict)}')
    # TODO(synk): espeak phonemizer not available; char-based tokenizer + language
    # table stand-in kept identical to the reference's simplified English path.
    texts, _languages = cond_dict['espeak']
    ids, mask = tokenize_texts(texts)
    return _forward_core(params, ids, mask,
                         cond_dict['speaker'][0],
                         cond_dict['emotion'][0],
                         cond_dict['fmax'][0],
                         cond_dict['pitch_std'][0],
                         cond_dict['speaking_rate'][0],
                         cond_dict['language_id'][0])


# ---------------------------------------------------------------------------
if __name__ == "__main__":
    key = jax.random.PRNGKey(0)
    pkey, k_spk, k_emo, k_f, k_p, k_r = jax.random.split(key, 6)
    params = init_params(pkey)

    B = 2
    texts = ["Hello, Pallas TPU kernels!", "Zonos prefix conditioner test 42."]
    languages = ["en-us", "en-us"]

    cond_dict = {
        'espeak': (texts, languages),
        'speaker': (jax.random.normal(k_spk, (B, 1, SPK_DIM), jnp.float32),),
        'emotion': (jax.nn.softmax(jax.random.normal(k_emo, (B, 1, EMO_DIM), jnp.float32), -1),),
        'fmax': (jax.random.uniform(k_f, (B, 1, 1), jnp.float32, minval=0.1, maxval=1.0),),
        'pitch_std': (jax.random.uniform(k_p, (B, 1, 1), jnp.float32, minval=0.1, maxval=1.0),),
        'speaking_rate': (jax.random.uniform(k_r, (B, 1, 1), jnp.float32, minval=0.1, maxval=1.0),),
        'language_id': (jnp.zeros((B, 1, 1), jnp.int32),),
    }

    out = prefix_conditioner_forward(params, cond_dict)
    out = jax.block_until_ready(out)
    assert out.ndim == 3 and out.shape[0] == B and out.shape[-1] == D_MODEL
    assert bool(jnp.all(jnp.isfinite(out)))
    print("KERNEL_OK")
</pallas_src>

<mosaic_0001>
module attributes {stable_mosaic.version = 11 : i64} {
  func.func @_proj_layernorm_kernel(%arg0: i32, %arg1: memref<80x256xbf16, #tpu.memory_space<vmem>>, %arg2: memref<256x256xbf16, #tpu.memory_space<vmem>>, %arg3: memref<1x256xf32, #tpu.memory_space<vmem>>, %arg4: memref<1x256xf32, #tpu.memory_space<vmem>>, %arg5: memref<1x256xf32, #tpu.memory_space<vmem>>, %arg6: memref<80x256xf32, #tpu.memory_space<vmem>>) attributes {dimension_semantics = [#tpu.dimension_semantics<parallel>], iteration_bounds = array<i64: 1>, scalar_prefetch = 0 : i64, scratch_operands = 0 : i64, tpu.core_type = #tpu.core_type<tc>, window_params = [{transform_indices = @transform_0, window_bounds = array<i64: 80, 256>}, {pipeline_mode = #tpu.pipeline_mode<synchronous>, transform_indices = @transform_1, window_bounds = array<i64: 256, 256>}, {pipeline_mode = #tpu.pipeline_mode<synchronous>, transform_indices = @transform_2, window_bounds = array<i64: 1, 256>}, {pipeline_mode = #tpu.pipeline_mode<synchronous>, transform_indices = @transform_3, window_bounds = array<i64: 1, 256>}, {pipeline_mode = #tpu.pipeline_mode<synchronous>, transform_indices = @transform_4, window_bounds = array<i64: 1, 256>}, {transform_indices = @transform_5, window_bounds = array<i64: 80, 256>}]} {
    %c0 = arith.constant 0 : index
    %c0_0 = arith.constant 0 : index
    %0 = vector.load %arg1[%c0, %c0_0] : memref<80x256xbf16, #tpu.memory_space<vmem>>, vector<80x256xbf16>
    %c0_1 = arith.constant 0 : index
    %c0_2 = arith.constant 0 : index
    %1 = vector.load %arg2[%c0_1, %c0_2] : memref<256x256xbf16, #tpu.memory_space<vmem>>, vector<256x256xbf16>
    %cst = arith.constant dense<0.000000e+00> : vector<80x256xf32>
    %2 = tpu.matmul %0, %1, %cst {dimension_numbers = #tpu.dot_dimension_numbers<[1], [0], [0], [1], [0, 0, 1, 1], [], []>} : vector<80x256xbf16>, vector<256x256xbf16>, vector<80x256xf32> -> vector<80x256xf32>
    %c0_3 = arith.constant 0 : index
    %c0_4 = arith.constant 0 : index
    %3 = vector.load %arg3[%c0_3, %c0_4] : memref<1x256xf32, #tpu.memory_space<vmem>>, vector<1x256xf32>
    %4 = vector.broadcast %3 : vector<1x256xf32> to vector<80x256xf32>
    %5 = arith.addf %2, %4 : vector<80x256xf32>
    %cst_5 = arith.constant dense<0.000000e+00> : vector<80xf32>
    %6 = vector.multi_reduction <add>, %5, %cst_5 [1] : vector<80x256xf32> to vector<80xf32>
    %7 = vector.shape_cast %6 : vector<80xf32> to vector<80x1xf32>
    %cst_6 = arith.constant 2.560000e+02 : f32
    %8 = vector.broadcast %cst_6 : f32 to vector<80x1xf32>
    %9 = arith.divf %7, %8 : vector<80x1xf32>
    %10 = vector.broadcast %9 : vector<80x1xf32> to vector<80x256xf32>
    %11 = arith.subf %5, %10 : vector<80x256xf32>
    %12 = arith.mulf %11, %11 : vector<80x256xf32>
    %cst_7 = arith.constant dense<0.000000e+00> : vector<80xf32>
    %13 = vector.multi_reduction <add>, %12, %cst_7 [1] : vector<80x256xf32> to vector<80xf32>
    %14 = vector.shape_cast %13 : vector<80xf32> to vector<80x1xf32>
    %cst_8 = arith.constant 2.560000e+02 : f32
    %15 = vector.broadcast %cst_8 : f32 to vector<80x1xf32>
    %16 = arith.divf %14, %15 : vector<80x1xf32>
    %cst_9 = arith.constant 9.99999974E-6 : f32
    %17 = vector.broadcast %cst_9 : f32 to vector<80x1xf32>
    %18 = arith.addf %16, %17 : vector<80x1xf32>
    %19 = math.rsqrt %18 : vector<80x1xf32>
    %20 = vector.broadcast %19 : vector<80x1xf32> to vector<80x256xf32>
    %21 = arith.mulf %11, %20 : vector<80x256xf32>
    %c0_10 = arith.constant 0 : index
    %c0_11 = arith.constant 0 : index
    %22 = vector.load %arg4[%c0_10, %c0_11] : memref<1x256xf32, #tpu.memory_space<vmem>>, vector<1x256xf32>
    %23 = vector.broadcast %22 : vector<1x256xf32> to vector<80x256xf32>
    %24 = arith.mulf %21, %23 : vector<80x256xf32>
    %c0_12 = arith.constant 0 : index
    %c0_13 = arith.constant 0 : index
    %25 = vector.load %arg5[%c0_12, %c0_13] : memref<1x256xf32, #tpu.memory_space<vmem>>, vector<1x256xf32>
    %26 = vector.broadcast %25 : vector<1x256xf32> to vector<80x256xf32>
    %27 = arith.addf %24, %26 : vector<80x256xf32>
    %c0_14 = arith.constant 0 : index
    %c0_15 = arith.constant 0 : index
    %28 = vector.load %arg6[%c0_14, %c0_15] : memref<80x256xf32, #tpu.memory_space<vmem>>, vector<80x256xf32>
    tpu.vector_store %arg6[%c0_14, %c0_15], %27 {strides = array<i32>} : memref<80x256xf32, #tpu.memory_space<vmem>>, vector<80x256xf32>,
    return
  }
  func.func @transform_0(%arg0: i32) -> (i32, i32) {
    %c0_i32 = arith.constant 0 : i32
    %c0_i32_0 = arith.constant 0 : i32
    return %arg0, %c0_i32 : i32, i32
  }
  func.func @transform_1(%arg0: i32) -> (i32, i32) {
    %c0_i32 = arith.constant 0 : i32
    %c0_i32_0 = arith.constant 0 : i32
    %c0_i32_1 = arith.constant 0 : i32
    return %c0_i32, %c0_i32_0 : i32, i32
  }
  func.func @transform_2(%arg0: i32) -> (i32, i32) {
    %c0_i32 = arith.constant 0 : i32
    %c0_i32_0 = arith.constant 0 : i32
    %c0_i32_1 = arith.constant 0 : i32
    return %c0_i32, %c0_i32_0 : i32, i32
  }
  func.func @transform_3(%arg0: i32) -> (i32, i32) {
    %c0_i32 = arith.constant 0 : i32
    %c0_i32_0 = arith.constant 0 : i32
    %c0_i32_1 = arith.constant 0 : i32
    return %c0_i32, %c0_i32_0 : i32, i32
  }
  func.func @transform_4(%arg0: i32) -> (i32, i32) {
    %c0_i32 = arith.constant 0 : i32
    %c0_i32_0 = arith.constant 0 : i32
    %c0_i32_1 = arith.constant 0 : i32
    return %c0_i32, %c0_i32_0 : i32, i32
  }
  func.func @transform_5(%arg0: i32) -> (i32, i32) {
    %c0_i32 = arith.constant 0 : i32
    %c0_i32_0 = arith.constant 0 : i32
    return %arg0, %c0_i32 : i32, i32
  }
}

</mosaic_0001>

<llo_original>
// kernel: _forward_core.1
$region0: #{_forward_core.1}
  #allocation0 [shape = 'u32[]', space=smem, size = 0x4, offset = 0x4, fixed_abs, tag = 'smem constant byte address 0x4 - core index']
  #allocation1 [shape = 'u32[72,128]{1,0:T(1,128)}', space=vmem, size = 0x9000, scoped, tag = 'internal scratch']
  %s0 = inlined_call_operand.vmem [shape: bf16[80,256], index: 0, kind: input, shape index: {}]
  %s1 = inlined_call_operand.vmem [shape: bf16[256,256], index: 1, kind: input, shape index: {}]
  %s2 = inlined_call_operand.vmem [shape: f32[1,256], index: 2, kind: input, shape index: {}]
  %s3 = inlined_call_operand.vmem [shape: f32[1,256], index: 3, kind: input, shape index: {}]
  %s4 = inlined_call_operand.vmem [shape: f32[1,256], index: 4, kind: input, shape index: {}]
  %s5 = inlined_call_operand.vmem [shape: f32[80,256], index: 5, kind: output, shape index: {}]
  %s6 = sld [smem:[#allocation0]]
  $region30: #{_forward_core.1} parent=0
    _
  %s8 = ssub.s32 1, %s6
  %s9 = scalar_select 0, %s8, %s6
  // Predicated region
  $region2: #{_forward_core.1} parent=0 // pred_check
    _
  $region3: #{_forward_core.1} parent=0 // pred_check_branch
    %11 = sbr.rel (0) target = $region5
  $region4: #{_forward_core.1} parent=0 // pred_region
    _
  $region5: #{_forward_core.1} parent=0 // pred_fallthru
    _
  // Predicated region
  $region6: #{_forward_core.1} parent=0 // pred_check
    _
  $region7: #{_forward_core.1} parent=0 // pred_check_branch
    %13 = sbr.rel (0) target = $region9
  $region8: #{_forward_core.1} parent=0 // pred_region
    _
  $region9: #{_forward_core.1} parent=0 // pred_fallthru
    _
  // Predicated region
  $region10: #{_forward_core.1} parent=0 // pred_check
    _
  $region11: #{_forward_core.1} parent=0 // pred_check_branch
    %15 = sbr.rel (0) target = $region13
  $region12: #{_forward_core.1} parent=0 // pred_region
    _
  $region13: #{_forward_core.1} parent=0 // pred_fallthru
    _
  // Predicated region
  $region14: #{_forward_core.1} parent=0 // pred_check
    _
  $region15: #{_forward_core.1} parent=0 // pred_check_branch
    %17 = sbr.rel (0) target = $region17
  $region16: #{_forward_core.1} parent=0 // pred_region
    _
  $region17: #{_forward_core.1} parent=0 // pred_fallthru
    _
  // Predicated region
  $region18: #{_forward_core.1} parent=0 // pred_check
    _
  $region19: #{_forward_core.1} parent=0 // pred_check_branch
    %19 = sbr.rel (0) target = $region21
  $region20: #{_forward_core.1} parent=0 // pred_region
    _
  $region21: #{_forward_core.1} parent=0 // pred_fallthru
    _
  %v20 = vld [vmem:[%s0] sm:$0xff]
  %v21 = vld [vmem:[%s0 + $0x8] sm:$0xff]
  %v22 = vld [vmem:[%s0 + $0x10] sm:$0xff]
  %v23 = vld [vmem:[%s0 + $0x18] sm:$0xff]
  %v24 = vld [vmem:[%s0 + $0x20] sm:$0xff]
  %v25 = vld [vmem:[%s0 + $0x28] sm:$0xff]
  %v26 = vld [vmem:[%s0 + $0x30] sm:$0xff]
  %v27 = vld [vmem:[%s0 + $0x38] sm:$0xff]
  %v28 = vld [vmem:[%s0 + $0x40] sm:$0xff]
  %v29 = vld [vmem:[%s0 + $0x48] sm:$0xff]
  %v30 = vld [vmem:[%s1] sm:$0xff]
  %v31 = vld [vmem:[%s1 + $0x8] sm:$0xff]
  %v32 = vld [vmem:[%s1 + $0x10] sm:$0xff]
  %v33 = vld [vmem:[%s1 + $0x18] sm:$0xff]
  %v34 = vld [vmem:[%s1 + $0x20] sm:$0xff]
  %v35 = vld [vmem:[%s1 + $0x28] sm:$0xff]
  %v36 = vld [vmem:[%s1 + $0x30] sm:$0xff]
  %v37 = vld [vmem:[%s1 + $0x38] sm:$0xff]
  %v38 = vld [vmem:[%s1 + $0x40] sm:$0xff]
  %v39 = vld [vmem:[%s1 + $0x48] sm:$0xff]
  %v40 = vld [vmem:[%s1 + $0x50] sm:$0xff]
  %v41 = vld [vmem:[%s1 + $0x58] sm:$0xff]
  %v42 = vld [vmem:[%s1 + $0x60] sm:$0xff]
  %v43 = vld [vmem:[%s1 + $0x68] sm:$0xff]
  %v44 = vld [vmem:[%s1 + $0x70] sm:$0xff]
  %v45 = vld [vmem:[%s1 + $0x78] sm:$0xff]
  %v46 = vld [vmem:[%s1 + $0x80] sm:$0xff]
  %v47 = vld [vmem:[%s1 + $0x88] sm:$0xff]
  %v48 = vld [vmem:[%s1 + $0x90] sm:$0xff]
  %v49 = vld [vmem:[%s1 + $0x98] sm:$0xff]
  %v50 = vld [vmem:[%s1 + $0xa0] sm:$0xff]
  %v51 = vld [vmem:[%s1 + $0xa8] sm:$0xff]
  %v52 = vld [vmem:[%s1 + $0xb0] sm:$0xff]
  %v53 = vld [vmem:[%s1 + $0xb8] sm:$0xff]
  %v54 = vld [vmem:[%s1 + $0xc0] sm:$0xff]
  %v55 = vld [vmem:[%s1 + $0xc8] sm:$0xff]
  %v56 = vld [vmem:[%s1 + $0xd0] sm:$0xff]
  %v57 = vld [vmem:[%s1 + $0xd8] sm:$0xff]
  %v58 = vld [vmem:[%s1 + $0xe0] sm:$0xff]
  %v59 = vld [vmem:[%s1 + $0xe8] sm:$0xff]
  %v60 = vld [vmem:[%s1 + $0xf0] sm:$0xff]
  %v61 = vld [vmem:[%s1 + $0xf8] sm:$0xff]
  %v62 = vld [vmem:[%s2] sm:$0x3]
  %v64 = vperm.slane %v62, 0
  %v65 = vperm.slane %v62, 1
  %v78 = vunpack.c.l.b16 %v20
  %v79 = vunpack.c.h.b16 %v20
  %v80 = vunpack.c.l.b16 %v21
  %v81 = vunpack.c.h.b16 %v21
  %v82 = vunpack.c.l.b16 %v22
  %v83 = vunpack.c.h.b16 %v22
  %v84 = vunpack.c.l.b16 %v23
  %v85 = vunpack.c.h.b16 %v23
  %v86 = vunpack.c.l.b16 %v24
  %v87 = vunpack.c.h.b16 %v24
  %v88 = vunpack.c.l.b16 %v25
  %v89 = vunpack.c.h.b16 %v25
  %v90 = vunpack.c.l.b16 %v26
  %v91 = vunpack.c.h.b16 %v26
  %v92 = vunpack.c.l.b16 %v27
  %v93 = vunpack.c.h.b16 %v27
  %v94 = vunpack.c.l.b16 %v28
  %v95 = vunpack.c.h.b16 %v28
  %v96 = vunpack.c.l.b16 %v29
  %v97 = vunpack.c.h.b16 %v29
  %v98 = vpack.c.b16 %v80, %v78
  %v99 = vpack.c.b16 %v81, %v79
  %v100 = vpack.c.b16 %v84, %v82
  %v101 = vpack.c.b16 %v85, %v83
  %v102 = vpack.c.b16 %v88, %v86
  %v103 = vpack.c.b16 %v89, %v87
  %v104 = vpack.c.b16 %v92, %v90
  %v105 = vpack.c.b16 %v93, %v91
  %v106 = vpack.c.b16 %v96, %v94
  %v107 = vpack.c.b16 %v97, %v95
  %v150 = vunpack.c.l.b16 %v30
  %v151 = vunpack.c.h.b16 %v30
  %v152 = vunpack.c.l.b16 %v31
  %v153 = vunpack.c.h.b16 %v31
  %v154 = vunpack.c.l.b16 %v32
  %v155 = vunpack.c.h.b16 %v32
  %v156 = vunpack.c.l.b16 %v33
  %v157 = vunpack.c.h.b16 %v33
  %v158 = vunpack.c.l.b16 %v34
  %v159 = vunpack.c.h.b16 %v34
  %v160 = vunpack.c.l.b16 %v35
  %v161 = vunpack.c.h.b16 %v35
  %v162 = vunpack.c.l.b16 %v36
  %v163 = vunpack.c.h.b16 %v36
  %v164 = vunpack.c.l.b16 %v37
  %v165 = vunpack.c.h.b16 %v37
  %v166 = vunpack.c.l.b16 %v38
  %v167 = vunpack.c.h.b16 %v38
  %v168 = vunpack.c.l.b16 %v39
  %v169 = vunpack.c.h.b16 %v39
  %v170 = vunpack.c.l.b16 %v40
  %v171 = vunpack.c.h.b16 %v40
  %v172 = vunpack.c.l.b16 %v41
  %v173 = vunpack.c.h.b16 %v41
  %v174 = vunpack.c.l.b16 %v42
  %v175 = vunpack.c.h.b16 %v42
  %v176 = vunpack.c.l.b16 %v43
  %v177 = vunpack.c.h.b16 %v43
  %v178 = vunpack.c.l.b16 %v44
  %v179 = vunpack.c.h.b16 %v44
  %v180 = vunpack.c.l.b16 %v45
  %v181 = vunpack.c.h.b16 %v45
  %v182 = vunpack.c.l.b16 %v46
  %v183 = vunpack.c.h.b16 %v46
  %v184 = vunpack.c.l.b16 %v47
  %v185 = vunpack.c.h.b16 %v47
  %v186 = vunpack.c.l.b16 %v48
  %v187 = vunpack.c.h.b16 %v48
  %v188 = vunpack.c.l.b16 %v49
  %v189 = vunpack.c.h.b16 %v49
  %v190 = vunpack.c.l.b16 %v50
  %v191 = vunpack.c.h.b16 %v50
  %v192 = vunpack.c.l.b16 %v51
  %v193 = vunpack.c.h.b16 %v51
  %v194 = vunpack.c.l.b16 %v52
  %v195 = vunpack.c.h.b16 %v52
  %v196 = vunpack.c.l.b16 %v53
  %v197 = vunpack.c.h.b16 %v53
  %v198 = vunpack.c.l.b16 %v54
  %v199 = vunpack.c.h.b16 %v54
  %v200 = vunpack.c.l.b16 %v55
  %v201 = vunpack.c.h.b16 %v55
  %v202 = vunpack.c.l.b16 %v56
  %v203 = vunpack.c.h.b16 %v56
  %v204 = vunpack.c.l.b16 %v57
  %v205 = vunpack.c.h.b16 %v57
  %v206 = vunpack.c.l.b16 %v58
  %v207 = vunpack.c.h.b16 %v58
  %v208 = vunpack.c.l.b16 %v59
  %v209 = vunpack.c.h.b16 %v59
  %v210 = vunpack.c.l.b16 %v60
  %v211 = vunpack.c.h.b16 %v60
  %v212 = vunpack.c.l.b16 %v61
  %v213 = vunpack.c.h.b16 %v61
  %v214 = vpack.c.b16 %v152, %v150
  %v215 = vpack.c.b16 %v153, %v151
  %v216 = vpack.c.b16 %v156, %v154
  %v217 = vpack.c.b16 %v157, %v155
  %v218 = vpack.c.b16 %v160, %v158
  %v219 = vpack.c.b16 %v161, %v159
  %v220 = vpack.c.b16 %v164, %v162
  %v221 = vpack.c.b16 %v165, %v163
  %v222 = vpack.c.b16 %v168, %v166
  %v223 = vpack.c.b16 %v169, %v167
  %v224 = vpack.c.b16 %v172, %v170
  %v225 = vpack.c.b16 %v173, %v171
  %v226 = vpack.c.b16 %v176, %v174
  %v227 = vpack.c.b16 %v177, %v175
  %v228 = vpack.c.b16 %v180, %v178
  %v229 = vpack.c.b16 %v181, %v179
  %v230 = vpack.c.b16 %v184, %v182
  %v231 = vpack.c.b16 %v185, %v183
  %v232 = vpack.c.b16 %v188, %v186
  %v233 = vpack.c.b16 %v189, %v187
  %v234 = vpack.c.b16 %v192, %v190
  %v235 = vpack.c.b16 %v193, %v191
  %v236 = vpack.c.b16 %v196, %v194
  %v237 = vpack.c.b16 %v197, %v195
  %v238 = vpack.c.b16 %v200, %v198
  %v239 = vpack.c.b16 %v201, %v199
  %v240 = vpack.c.b16 %v204, %v202
  %v241 = vpack.c.b16 %v205, %v203
  %v242 = vpack.c.b16 %v208, %v206
  %v243 = vpack.c.b16 %v209, %v207
  %v244 = vpack.c.b16 %v212, %v210
  %v245 = vpack.c.b16 %v213, %v211
  %278 = vmatpush.bf16.msra.mxu0 %v228
  %279 = vmatpush.bf16.msra.mxu0 %v226
  %280 = vmatpush.bf16.msra.mxu0 %v224
  %281 = vmatpush.bf16.msra.mxu0 %v222
  %282 = vmatpush.bf16.msra.mxu0 %v220
  %283 = vmatpush.bf16.msra.mxu0 %v218
  %284 = vmatpush.bf16.msra.mxu0 %v216
  %285 = vmatpush.bf16.msra.mxu0 %v214
  %286 = vmatmul.bf16.gmra.mxu0 %v98
  %v287 = vpop.f32.mrf.mxu0
  %v288 = vadd.f32 %v64, %v287
  %v289 = vpop.f32.mrf.mxu0
  %v290 = vadd.f32 %v64, %v289
  %291 = vmatmul.bf16.gmra.mxu0 %v100
  %v292 = vpop.f32.mrf.mxu0
  %v293 = vadd.f32 %v64, %v292
  %v294 = vpop.f32.mrf.mxu0
  %v295 = vadd.f32 %v64, %v294
  %296 = vmatmul.bf16.gmra.mxu0 %v102
  %v297 = vpop.f32.mrf.mxu0
  %v298 = vadd.f32 %v64, %v297
  %v299 = vpop.f32.mrf.mxu0
  %v300 = vadd.f32 %v64, %v299
  %301 = vmatmul.bf16.gmra.mxu0 %v104
  %v302 = vpop.f32.mrf.mxu0
  %v303 = vadd.f32 %v64, %v302
  %v304 = vpop.f32.mrf.mxu0
  %v305 = vadd.f32 %v64, %v304
  %306 = vmatmul.bf16.gmra.mxu0 %v106
  %v307 = vpop.f32.mrf.mxu0
  %v308 = vadd.f32 %v64, %v307
  %v309 = vpop.f32.mrf.mxu0
  %v310 = vadd.f32 %v64, %v309
  %311 = vdwg.mxu0
  %312 = vmatpush.bf16.msra.mxu0 %v244
  %313 = vmatpush.bf16.msra.mxu0 %v242
  %314 = vmatpush.bf16.msra.mxu0 %v240
  %315 = vmatpush.bf16.msra.mxu0 %v238
  %316 = vmatpush.bf16.msra.mxu0 %v236
  %317 = vmatpush.bf16.msra.mxu0 %v234
  %318 = vmatpush.bf16.msra.mxu0 %v232
  %319 = vmatpush.bf16.msra.mxu0 %v230
  %320 = vmatmul.bf16.gmra.mxu0 %v99
  %v321 = vpop.f32.mrf.mxu0
  %v322 = vadd.f32 %v288, %v321
  %v323 = vpop.f32.mrf.mxu0
  %v324 = vadd.f32 %v290, %v323
  %325 = vmatmul.bf16.gmra.mxu0 %v101
  %v326 = vpop.f32.mrf.mxu0
  %v327 = vadd.f32 %v293, %v326
  %v328 = vpop.f32.mrf.mxu0
  %v329 = vadd.f32 %v295, %v328
  %330 = vmatmul.bf16.gmra.mxu0 %v103
  %v331 = vpop.f32.mrf.mxu0
  %v332 = vadd.f32 %v298, %v331
  %v333 = vpop.f32.mrf.mxu0
  %v334 = vadd.f32 %v300, %v333
  %335 = vmatmul.bf16.gmra.mxu0 %v105
  %v336 = vpop.f32.mrf.mxu0
  %v337 = vadd.f32 %v303, %v336
  %v338 = vpop.f32.mrf.mxu0
  %v339 = vadd.f32 %v305, %v338
  %340 = vmatmul.bf16.gmra.mxu0 %v107
  %v341 = vpop.f32.mrf.mxu0
  %v342 = vadd.f32 %v308, %v341
  %v343 = vpop.f32.mrf.mxu0
  %v344 = vadd.f32 %v310, %v343
  %345 = vdwg.mxu0
  %346 = vmatpush.bf16.msra.mxu0 %v229
  %347 = vmatpush.bf16.msra.mxu0 %v227
  %348 = vmatpush.bf16.msra.mxu0 %v225
  %349 = vmatpush.bf16.msra.mxu0 %v223
  %350 = vmatpush.bf16.msra.mxu0 %v221
  %351 = vmatpush.bf16.msra.mxu0 %v219
  %352 = vmatpush.bf16.msra.mxu0 %v217
  %353 = vmatpush.bf16.msra.mxu0 %v215
  %354 = vmatmul.bf16.gmra.mxu0 %v98
  %v355 = vpop.f32.mrf.mxu0
  %v356 = vadd.f32 %v65, %v355
  %v357 = vpop.f32.mrf.mxu0
  %v358 = vadd.f32 %v65, %v357
  %359 = vmatmul.bf16.gmra.mxu0 %v100
  %v360 = vpop.f32.mrf.mxu0
  %v361 = vadd.f32 %v65, %v360
  %v362 = vpop.f32.mrf.mxu0
  %v363 = vadd.f32 %v65, %v362
  %364 = vmatmul.bf16.gmra.mxu0 %v102
  %v365 = vpop.f32.mrf.mxu0
  %v366 = vadd.f32 %v65, %v365
  %v367 = vpop.f32.mrf.mxu0
  %v368 = vadd.f32 %v65, %v367
  %369 = vmatmul.bf16.gmra.mxu0 %v104
  %v370 = vpop.f32.mrf.mxu0
  %v371 = vadd.f32 %v65, %v370
  %v372 = vpop.f32.mrf.mxu0
  %v373 = vadd.f32 %v65, %v372
  %374 = vmatmul.bf16.gmra.mxu0 %v106
  %v375 = vpop.f32.mrf.mxu0
  %v376 = vadd.f32 %v65, %v375
  %v377 = vpop.f32.mrf.mxu0
  %v378 = vadd.f32 %v65, %v377
  %379 = vdwg.mxu0
  %380 = vmatpush.bf16.msra.mxu0 %v245
  %381 = vmatpush.bf16.msra.mxu0 %v243
  %382 = vmatpush.bf16.msra.mxu0 %v241
  %383 = vmatpush.bf16.msra.mxu0 %v239
  %384 = vmatpush.bf16.msra.mxu0 %v237
  %385 = vmatpush.bf16.msra.mxu0 %v235
  %386 = vmatpush.bf16.msra.mxu0 %v233
  %387 = vmatpush.bf16.msra.mxu0 %v231
  %388 = vmatmul.bf16.gmra.mxu0 %v99
  %v389 = vpop.f32.mrf.mxu0
  %v390 = vadd.f32 %v356, %v389
  %v391 = vpop.f32.mrf.mxu0
  %v392 = vadd.f32 %v358, %v391
  %393 = vmatmul.bf16.gmra.mxu0 %v101
  %v394 = vpop.f32.mrf.mxu0
  %v395 = vadd.f32 %v361, %v394
  %v396 = vpop.f32.mrf.mxu0
  %v397 = vadd.f32 %v363, %v396
  %398 = vmatmul.bf16.gmra.mxu0 %v103
  %v399 = vpop.f32.mrf.mxu0
  %v400 = vadd.f32 %v366, %v399
  %v401 = vpop.f32.mrf.mxu0
  %v402 = vadd.f32 %v368, %v401
  %403 = vmatmul.bf16.gmra.mxu0 %v105
  %v404 = vpop.f32.mrf.mxu0
  %v405 = vadd.f32 %v371, %v404
  %v406 = vpop.f32.mrf.mxu0
  %v407 = vadd.f32 %v373, %v406
  %408 = vmatmul.bf16.gmra.mxu0 %v107
  %v409 = vpop.f32.mrf.mxu0
  %v410 = vadd.f32 %v376, %v409
  %v411 = vpop.f32.mrf.mxu0
  %v412 = vadd.f32 %v378, %v411
  %413 = vdwg.mxu0
  %v414 = vadd.f32 %v322, %v390
  %415 = vadd.xlane.f32.xlu0 %v414
  %v416 = vpop.xlane.xlu0 %415
  %v417 = vadd.f32 %v324, %v392
  %418 = vadd.xlane.f32.xlu0 %v417
  %v419 = vpop.xlane.xlu0 %418
  %v420 = vadd.f32 %v327, %v395
  %421 = vadd.xlane.f32.xlu0 %v420
  %v422 = vpop.xlane.xlu0 %421
  %v423 = vadd.f32 %v329, %v397
  %424 = vadd.xlane.f32.xlu0 %v423
  %v425 = vpop.xlane.xlu0 %424
  %v426 = vadd.f32 %v332, %v400
  %427 = vadd.xlane.f32.xlu0 %v426
  %v428 = vpop.xlane.xlu0 %427
  %v429 = vadd.f32 %v334, %v402
  %430 = vadd.xlane.f32.xlu0 %v429
  %v431 = vpop.xlane.xlu0 %430
  %v432 = vadd.f32 %v337, %v405
  %433 = vadd.xlane.f32.xlu0 %v432
  %v434 = vpop.xlane.xlu0 %433
  %v435 = vadd.f32 %v339, %v407
  %436 = vadd.xlane.f32.xlu0 %v435
  %v437 = vpop.xlane.xlu0 %436
  %v438 = vadd.f32 %v342, %v410
  %439 = vadd.xlane.f32.xlu0 %v438
  %v440 = vpop.xlane.xlu0 %439
  %v441 = vadd.f32 %v344, %v412
  %442 = vadd.xlane.f32.xlu0 %v441
  %v443 = vpop.xlane.xlu0 %442
  %v444 = vrcp.pop 256.0
  %v445 = vmul.f32 256.0, %v444
  %v446 = vsub.f32 1.0, %v445
  %v447 = vmul.f32 %v444, %v446
  %v448 = vadd.f32 %v444, %v447
  %vm449 = vweird.f32 %v444
  %v450 = vsel %vm449, %v444, %v448
  %v451 = vmul.f32 %v416, %v450
  %v452 = vmul.f32 %v419, %v450
  %v453 = vmul.f32 %v422, %v450
  %v454 = vmul.f32 %v425, %v450
  %v455 = vmul.f32 %v428, %v450
  %v456 = vmul.f32 %v431, %v450
  %v457 = vmul.f32 %v434, %v450
  %v458 = vmul.f32 %v437, %v450
  %v459 = vmul.f32 %v440, %v450
  %v460 = vmul.f32 %v443, %v450
  %v461 = vsub.f32 %v322, %v451
  %v462 = vsub.f32 %v390, %v451
  %v463 = vsub.f32 %v324, %v452
  %v464 = vsub.f32 %v392, %v452
  %v465 = vsub.f32 %v327, %v453
  %v466 = vsub.f32 %v395, %v453
  %v467 = vsub.f32 %v329, %v454
  %v468 = vsub.f32 %v397, %v454
  %v469 = vsub.f32 %v332, %v455
  %v470 = vsub.f32 %v400, %v455
  %v471 = vsub.f32 %v334, %v456
  %v472 = vsub.f32 %v402, %v456
  %v473 = vsub.f32 %v337, %v457
  %v474 = vsub.f32 %v405, %v457
  %v475 = vsub.f32 %v339, %v458
  %v476 = vsub.f32 %v407, %v458
  %v477 = vsub.f32 %v342, %v459
  %v478 = vsub.f32 %v410, %v459
  %v479 = vsub.f32 %v344, %v460
  %v480 = vsub.f32 %v412, %v460
  %v481 = vmul.f32 %v461, %v461
  %v482 = vmul.f32 %v462, %v462
  %v483 = vmul.f32 %v463, %v463
  %v484 = vmul.f32 %v464, %v464
  %v485 = vmul.f32 %v465, %v465
  %v486 = vmul.f32 %v466, %v466
  %v487 = vmul.f32 %v467, %v467
  %v488 = vmul.f32 %v468, %v468
  %v489 = vmul.f32 %v469, %v469
  %v490 = vmul.f32 %v470, %v470
  %v491 = vmul.f32 %v471, %v471
  %v492 = vmul.f32 %v472, %v472
  %v493 = vmul.f32 %v473, %v473
  %v494 = vmul.f32 %v474, %v474
  %v495 = vmul.f32 %v475, %v475
  %v496 = vmul.f32 %v476, %v476
  %v497 = vmul.f32 %v477, %v477
  %v498 = vmul.f32 %v478, %v478
  %v499 = vmul.f32 %v479, %v479
  %v500 = vmul.f32 %v480, %v480
  %v501 = vadd.f32 %v481, %v482
  %502 = vadd.xlane.f32.xlu0 %v501
  %v503 = vpop.xlane.xlu0 %502
  %v504 = vadd.f32 %v483, %v484
  %505 = vadd.xlane.f32.xlu0 %v504
  %v506 = vpop.xlane.xlu0 %505
  %v507 = vadd.f32 %v485, %v486
  %508 = vadd.xlane.f32.xlu0 %v507
  %v509 = vpop.xlane.xlu0 %508
  %v510 = vadd.f32 %v487, %v488
  %511 = vadd.xlane.f32.xlu0 %v510
  %v512 = vpop.xlane.xlu0 %511
  %v513 = vadd.f32 %v489, %v490
  %514 = vadd.xlane.f32.xlu0 %v513
  %v515 = vpop.xlane.xlu0 %514
  %v516 = vadd.f32 %v491, %v492
  %517 = vadd.xlane.f32.xlu0 %v516
  %v518 = vpop.xlane.xlu0 %517
  %v519 = vadd.f32 %v493, %v494
  %520 = vadd.xlane.f32.xlu0 %v519
  %v521 = vpop.xlane.xlu0 %520
  %v522 = vadd.f32 %v495, %v496
  %523 = vadd.xlane.f32.xlu0 %v522
  %v524 = vpop.xlane.xlu0 %523
  %v525 = vadd.f32 %v497, %v498
  %526 = vadd.xlane.f32.xlu0 %v525
  %v527 = vpop.xlane.xlu0 %526
  %v528 = vadd.f32 %v499, %v500
  %529 = vadd.xlane.f32.xlu0 %v528
  %v530 = vpop.xlane.xlu0 %529
  %v531 = vmul.f32 %v503, %v450
  %v532 = vmul.f32 %v506, %v450
  %v533 = vmul.f32 %v509, %v450
  %v534 = vmul.f32 %v512, %v450
  %v535 = vmul.f32 %v515, %v450
  %v536 = vmul.f32 %v518, %v450
  %v537 = vmul.f32 %v521, %v450
  %v538 = vmul.f32 %v524, %v450
  %v539 = vmul.f32 %v527, %v450
  %v540 = vmul.f32 %v530, %v450
  %v541 = vadd.f32 %v531, 1e-05
  %v542 = vadd.f32 %v532, 1e-05
  %v543 = vadd.f32 %v533, 1e-05
  %v544 = vadd.f32 %v534, 1e-05
  %v545 = vadd.f32 %v535, 1e-05
  %v546 = vadd.f32 %v536, 1e-05
  %v547 = vadd.f32 %v537, 1e-05
  %v548 = vadd.f32 %v538, 1e-05
  %v549 = vadd.f32 %v539, 1e-05
  %v550 = vadd.f32 %v540, 1e-05
  %v551 = vrsqrt.pop %v541
  %v552 = vmul.f32 %v551, %v541
  %v553 = vmul.f32 %v552, %v551
  %v554 = vmul.f32 0.5, %v553
  %v555 = vsub.f32 1.5, %v554
  %v556 = vmul.f32 %v551, %v555
  %vm557 = vweird.f32 %v541
  %vm558 = vweird.f32 %v551
  %vm559 = vmor %vm557, %vm558
  %v560 = vsel %vm559, %v551, %v556
  %v561 = vrsqrt.pop %v542
  %v562 = vmul.f32 %v561, %v542
  %v563 = vmul.f32 %v562, %v561
  %v564 = vmul.f32 0.5, %v563
  %v565 = vsub.f32 1.5, %v564
  %v566 = vmul.f32 %v561, %v565
  %vm567 = vweird.f32 %v542
  %vm568 = vweird.f32 %v561
  %vm569 = vmor %vm567, %vm568
  %v570 = vsel %vm569, %v561, %v566
  %v571 = vrsqrt.pop %v543
  %v572 = vmul.f32 %v571, %v543
  %v573 = vmul.f32 %v572, %v571
  %v574 = vmul.f32 0.5, %v573
  %v575 = vsub.f32 1.5, %v574
  %v576 = vmul.f32 %v571, %v575
  %vm577 = vweird.f32 %v543
  %vm578 = vweird.f32 %v571
  %vm579 = vmor %vm577, %vm578
  %v580 = vsel %vm579, %v571, %v576
  %v581 = vrsqrt.pop %v544
  %v582 = vmul.f32 %v581, %v544
  %v583 = vmul.f32 %v582, %v581
  %v584 = vmul.f32 0.5, %v583
  %v585 = vsub.f32 1.5, %v584
  %v586 = vmul.f32 %v581, %v585
  %vm587 = vweird.f32 %v544
  %vm588 = vweird.f32 %v581
  %vm589 = vmor %vm587, %vm588
  %v590 = vsel %vm589, %v581, %v586
  %v591 = vrsqrt.pop %v545
  %v592 = vmul.f32 %v591, %v545
  %v593 = vmul.f32 %v592, %v591
  %v594 = vmul.f32 0.5, %v593
  %v595 = vsub.f32 1.5, %v594
  %v596 = vmul.f32 %v591, %v595
  %vm597 = vweird.f32 %v545
  %vm598 = vweird.f32 %v591
  %vm599 = vmor %vm597, %vm598
  %v600 = vsel %vm599, %v591, %v596
  %v601 = vrsqrt.pop %v546
  %v602 = vmul.f32 %v601, %v546
  %v603 = vmul.f32 %v602, %v601
  %v604 = vmul.f32 0.5, %v603
  %v605 = vsub.f32 1.5, %v604
  %v606 = vmul.f32 %v601, %v605
  %vm607 = vweird.f32 %v546
  %vm608 = vweird.f32 %v601
  %vm609 = vmor %vm607, %vm608
  %v610 = vsel %vm609, %v601, %v606
  %v611 = vrsqrt.pop %v547
  %v612 = vmul.f32 %v611, %v547
  %v613 = vmul.f32 %v612, %v611
  %v614 = vmul.f32 0.5, %v613
  %v615 = vsub.f32 1.5, %v614
  %v616 = vmul.f32 %v611, %v615
  %vm617 = vweird.f32 %v547
  %vm618 = vweird.f32 %v611
  %vm619 = vmor %vm617, %vm618
  %v620 = vsel %vm619, %v611, %v616
  %v621 = vrsqrt.pop %v548
  %v622 = vmul.f32 %v621, %v548
  %v623 = vmul.f32 %v622, %v621
  %v624 = vmul.f32 0.5, %v623
  %v625 = vsub.f32 1.5, %v624
  %v626 = vmul.f32 %v621, %v625
  %vm627 = vweird.f32 %v548
  %vm628 = vweird.f32 %v621
  %vm629 = vmor %vm627, %vm628
  %v630 = vsel %vm629, %v621, %v626
  %v631 = vrsqrt.pop %v549
  %v632 = vmul.f32 %v631, %v549
  %v633 = vmul.f32 %v632, %v631
  %v634 = vmul.f32 0.5, %v633
  %v635 = vsub.f32 1.5, %v634
  %v636 = vmul.f32 %v631, %v635
  %vm637 = vweird.f32 %v549
  %vm638 = vweird.f32 %v631
  %vm639 = vmor %vm637, %vm638
  %v640 = vsel %vm639, %v631, %v636
  %v641 = vrsqrt.pop %v550
  %v642 = vmul.f32 %v641, %v550
  %v643 = vmul.f32 %v642, %v641
  %v644 = vmul.f32 0.5, %v643
  %v645 = vsub.f32 1.5, %v644
  %v646 = vmul.f32 %v641, %v645
  %vm647 = vweird.f32 %v550
  %vm648 = vweird.f32 %v641
  %vm649 = vmor %vm647, %vm648
  %v650 = vsel %vm649, %v641, %v646
  %v651 = vmul.f32 %v461, %v560
  %v652 = vmul.f32 %v462, %v560
  %v653 = vmul.f32 %v463, %v570
  %v654 = vmul.f32 %v464, %v570
  %v655 = vmul.f32 %v465, %v580
  %v656 = vmul.f32 %v466, %v580
  %v657 = vmul.f32 %v467, %v590
  %v658 = vmul.f32 %v468, %v590
  %v659 = vmul.f32 %v469, %v600
  %v660 = vmul.f32 %v470, %v600
  %v661 = vmul.f32 %v471, %v610
  %v662 = vmul.f32 %v472, %v610
  %v663 = vmul.f32 %v473, %v620
  %v664 = vmul.f32 %v474, %v620
  %v665 = vmul.f32 %v475, %v630
  %v666 = vmul.f32 %v476, %v630
  %v667 = vmul.f32 %v477, %v640
  %v668 = vmul.f32 %v478, %v640
  %v669 = vmul.f32 %v479, %v650
  %v670 = vmul.f32 %v480, %v650
  %v671 = vld [vmem:[%s3] sm:$0x3]
  %v673 = vperm.slane %v671, 0
  %v674 = vperm.slane %v671, 1
  %v677 = vmul.f32 %v651, %v673
  %v678 = vmul.f32 %v652, %v674
  %v679 = vmul.f32 %v653, %v673
  %v680 = vmul.f32 %v654, %v674
  %v681 = vmul.f32 %v655, %v673
  %v682 = vmul.f32 %v656, %v674
  %v683 = vmul.f32 %v657, %v673
  %v684 = vmul.f32 %v658, %v674
  %v685 = vmul.f32 %v659, %v673
  %v686 = vmul.f32 %v660, %v674
  %v687 = vmul.f32 %v661, %v673
  %v688 = vmul.f32 %v662, %v674
  %v689 = vmul.f32 %v663, %v673
  %v690 = vmul.f32 %v664, %v674
  %v691 = vmul.f32 %v665, %v673
  %v692 = vmul.f32 %v666, %v674
  %v693 = vmul.f32 %v667, %v673
  %v694 = vmul.f32 %v668, %v674
  %v695 = vmul.f32 %v669, %v673
  %v696 = vmul.f32 %v670, %v674
  %v697 = vld [vmem:[%s4] sm:$0x3]
  %v699 = vperm.slane %v697, 0
  %v700 = vperm.slane %v697, 1
  %v703 = vadd.f32 %v677, %v699
  %v704 = vadd.f32 %v678, %v700
  %v705 = vadd.f32 %v679, %v699
  %v706 = vadd.f32 %v680, %v700
  %v707 = vadd.f32 %v681, %v699
  %v708 = vadd.f32 %v682, %v700
  %v709 = vadd.f32 %v683, %v699
  %v710 = vadd.f32 %v684, %v700
  %v711 = vadd.f32 %v685, %v699
  %v712 = vadd.f32 %v686, %v700
  %v713 = vadd.f32 %v687, %v699
  %v714 = vadd.f32 %v688, %v700
  %v715 = vadd.f32 %v689, %v699
  %v716 = vadd.f32 %v690, %v700
  %v717 = vadd.f32 %v691, %v699
  %v718 = vadd.f32 %v692, %v700
  %v719 = vadd.f32 %v693, %v699
  %v720 = vadd.f32 %v694, %v700
  %v721 = vadd.f32 %v695, %v699
  %v722 = vadd.f32 %v696, %v700
  %723 = vst [vmem:[%s5] sm:$0xff] %v703
  %724 = vst [vmem:[%s5 + $0x8] sm:$0xff] %v704
  %725 = vst [vmem:[%s5 + $0x10] sm:$0xff] %v705
  %726 = vst [vmem:[%s5 + $0x18] sm:$0xff] %v706
  %727 = vst [vmem:[%s5 + $0x20] sm:$0xff] %v707
  %728 = vst [vmem:[%s5 + $0x28] sm:$0xff] %v708
  %729 = vst [vmem:[%s5 + $0x30] sm:$0xff] %v709
  %730 = vst [vmem:[%s5 + $0x38] sm:$0xff] %v710
  %731 = vst [vmem:[%s5 + $0x40] sm:$0xff] %v711
  %732 = vst [vmem:[%s5 + $0x48] sm:$0xff] %v712
  %733 = vst [vmem:[%s5 + $0x50] sm:$0xff] %v713
  %734 = vst [vmem:[%s5 + $0x58] sm:$0xff] %v714
  %735 = vst [vmem:[%s5 + $0x60] sm:$0xff] %v715
  %736 = vst [vmem:[%s5 + $0x68] sm:$0xff] %v716
  %737 = vst [vmem:[%s5 + $0x70] sm:$0xff] %v717
  %738 = vst [vmem:[%s5 + $0x78] sm:$0xff] %v718
  %739 = vst [vmem:[%s5 + $0x80] sm:$0xff] %v719
  %740 = vst [vmem:[%s5 + $0x88] sm:$0xff] %v720
  %741 = vst [vmem:[%s5 + $0x90] sm:$0xff] %v721
  %742 = vst [vmem:[%s5 + $0x98] sm:$0xff] %v722
  // Predicated region
  $region22: #{_forward_core.1} parent=0 // pred_check
    _
  $region23: #{_forward_core.1} parent=0 // pred_check_branch
    %744 = sbr.rel (0) target = $region25
  $region24: #{_forward_core.1} parent=0 // pred_region
    _
  $region25: #{_forward_core.1} parent=0 // pred_fallthru
    _
  // Predicated region
  $region26: #{_forward_core.1} parent=0 // pred_check
    _
  $region27: #{_forward_core.1} parent=0 // pred_check_branch
    %746 = sbr.rel (0) target = $region29
  $region28: #{_forward_core.1} parent=0 // pred_region
    _
  $region29: #{_forward_core.1} parent=0 // pred_fallthru
    _

</llo_original>
